<compile_context>
chip_gen: v5e
topology: v5e:2x2
jax: 0.10.0
libtpu: 0.0.40
codegen_flags: <defaults>
</compile_context>

<pallas_src>
import functools

import jax
import jax.numpy as jnp
from jax.experimental import pallas as pl
from jax.experimental.pallas import tpu as pltpu

EPS = 1e-5  # nn.BatchNorm1d default eps


def matmul_stats_kernel(x_ref, w_ref, gamma_ref, beta_ref,
                        y_ref, scale_ref, shift_ref,
                        mean_ref, m2_ref, *, tn, inv_n):
    """Pass 1: y = x @ W, chunked-Welford batch stats, folded BN affine."""
    t = pl.program_id(0)
    last = pl.num_programs(0) - 1

    # Linear (bias intentionally dropped: it cancels exactly under the
    # batch-mean subtraction performed by BatchNorm).
    y = jnp.dot(x_ref[...], w_ref[...], preferred_element_type=jnp.float32)
    y_ref[...] = y.astype(y_ref.dtype)

    # Per-tile centered moments (avoids E[y^2]-E[y]^2 cancellation).
    tile_mean = jnp.mean(y, axis=0, keepdims=True)
    d = y - tile_mean
    tile_m2 = jnp.sum(d * d, axis=0, keepdims=True)

    @pl.when(t == 0)
    def _init():
        mean_ref[...] = tile_mean
        m2_ref[...] = tile_m2

    @pl.when(t > 0)
    def _combine():
        # Welford / Chan parallel combine of (mean, M2) with equal-size tiles.
        n_a = (t * tn).astype(jnp.float32)   # rows accumulated so far
        n_b = float(tn)                      # rows in this tile
        n_ab = n_a + n_b
        delta = tile_mean - mean_ref[...]
        mean_ref[...] = mean_ref[...] + delta * (n_b / n_ab)
        m2_ref[...] = m2_ref[...] + tile_m2 + (delta * delta) * (n_a * (n_b / n_ab))

    @pl.when(t == last)
    def _finalize():
        var = m2_ref[...] * inv_n                     # biased variance (BN training)
        inv_std = jax.lax.rsqrt(var + EPS)
        s = gamma_ref[...] * inv_std                  # fold gamma * inv_std
        scale_ref[...] = s
        shift_ref[...] = beta_ref[...] - mean_ref[...] * s   # fold beta - mean*scale


def affine_kernel(scale_ref, shift_ref, y_ref, o_ref):
    """Pass 2: single fused mul+add per element (embarrassingly parallel)."""
    o_ref[...] = (y_ref[...] * scale_ref[...] + shift_ref[...]).astype(o_ref.dtype)


def feature_block(x, w_t, gamma, beta, *, tn=1024):
    """Linear (bias-free) + BatchNorm1d(training-mode stats).

    x:     (N, D_in)
    w_t:   (D_in, D_low)  — PyTorch weight (out,in) pre-transposed
    gamma: (1, D_low), beta: (1, D_low)
    """
    N, D_in = x.shape
    D_low = w_t.shape[1]
    tn = min(tn, N)
    assert N % tn == 0 and tn % 8 == 0, \
        "batch tile must divide N and align to sublanes (use %16 for bf16 inputs)"
    n_tiles = N // tn

    stats_kernel = functools.partial(matmul_stats_kernel, tn=tn, inv_n=1.0 / N)

    # ---- Pass 1: matmul + batch statistics + folded BN affine -------------
    y, scale, shift = pl.pallas_call(
        stats_kernel,
        out_shape=(
            jax.ShapeDtypeStruct((N, D_low), x.dtype),       # y (pre-BN activations)
            jax.ShapeDtypeStruct((1, D_low), jnp.float32),   # scale = gamma * inv_std
            jax.ShapeDtypeStruct((1, D_low), jnp.float32),   # shift = beta - mean*scale
        ),
        grid_spec=pltpu.PrefetchScalarGridSpec(
            num_scalar_prefetch=0,
            grid=(n_tiles,),
            in_specs=[
                pl.BlockSpec((tn, D_in), lambda t: (t, 0)),      # x tile
                pl.BlockSpec((D_in, D_low), lambda t: (0, 0)),   # W (resident)
                pl.BlockSpec((1, D_low), lambda t: (0, 0)),      # gamma
                pl.BlockSpec((1, D_low), lambda t: (0, 0)),      # beta
            ],
            out_specs=[
                pl.BlockSpec((tn, D_low), lambda t: (t, 0)),     # y tile
                pl.BlockSpec((1, D_low), lambda t: (0, 0)),      # scale (written once)
                pl.BlockSpec((1, D_low), lambda t: (0, 0)),      # shift (written once)
            ],
            scratch_shapes=[pltpu.VMEM((1, D_low), jnp.float32)] * 2,  # mean, M2
        ),
        compiler_params=pltpu.CompilerParams(
            # Running-moment scratch carries a sequential dependency.
            dimension_semantics=("arbitrary",),
        ),
    )(x, w_t, gamma, beta)

    # ---- Pass 2: elementwise affine, parallel over batch tiles ------------
    out = pl.pallas_call(
        affine_kernel,
        out_shape=jax.ShapeDtypeStruct((N, D_low), x.dtype),
        grid_spec=pltpu.PrefetchScalarGridSpec(
            num_scalar_prefetch=0,
            grid=(n_tiles,),
            in_specs=[
                pl.BlockSpec((1, D_low), lambda t: (0, 0)),      # scale
                pl.BlockSpec((1, D_low), lambda t: (0, 0)),      # shift
                pl.BlockSpec((tn, D_low), lambda t: (t, 0)),     # y tile
            ],
            out_specs=pl.BlockSpec((tn, D_low), lambda t: (t, 0)),
        ),
        compiler_params=pltpu.CompilerParams(
            dimension_semantics=("parallel",),   # megacore / 2-TC sharding
        ),
    )(scale, shift, y)
    return out


def reference(x, w_t, bias, gamma, beta):
    y = x @ w_t + bias
    mean = y.mean(axis=0, keepdims=True)
    var = ((y - mean) ** 2).mean(axis=0, keepdims=True)
    return gamma * (y - mean) / jnp.sqrt(var + EPS) + beta


if __name__ == "__main__":
    key = jax.random.PRNGKey(0)
    k_x, k_w, k_b, k_g = jax.random.split(key, 4)

    N, input_dim, low_dim = 256, 32, 16

    # weights_init_kaiming:
    #   Linear: kaiming_normal_(a=0, mode='fan_out') -> std = sqrt(2 / low_dim), bias = 0
    #   BatchNorm1d: weight ~ N(1.0, 0.01), bias = 0
    std_w = (2.0 / low_dim) ** 0.5
    w = jax.random.normal(k_w, (low_dim, input_dim), jnp.float32) * std_w  # PyTorch (out, in)
    w_t = w.T  # (input_dim, low_dim) for the kernel
    # Non-zero bias in the test only to demonstrate that dropping it in the
    # kernel is exact (BatchNorm cancels it); the module's init sets it to 0.
    bias = 0.5 * jax.random.normal(k_b, (1, low_dim), jnp.float32)
    gamma = (1.0 + 0.01 * jax.random.normal(k_g, (low_dim,), jnp.float32)).reshape(1, low_dim)
    beta = jnp.zeros((1, low_dim), jnp.float32)

    x = jax.random.normal(k_x, (N, input_dim), jnp.float32)

    # Small tile here to exercise the multi-tile Welford combine; production
    # default is tn=1024 (>=512 per the roofline guidance).
    out = feature_block(x, w_t, gamma, beta, tn=64)   # bias intentionally not passed
    out = jax.block_until_ready(out)

    ref = reference(x, w_t, bias, gamma, beta)
    assert out.shape == (N, low_dim)
    assert jnp.allclose(out, ref, atol=1e-4, rtol=1e-4), "mismatch vs reference"

    # TODO(synk): running_mean/running_var (BatchNorm1d buffers) are module
    # state, not part of forward()'s output, and are not produced here.
    print("KERNEL_OK")
</pallas_src>

<mosaic_0001>
module attributes {stable_mosaic.version = 11 : i64} {
  func.func @matmul_stats_kernel(%arg0: i32, %arg1: memref<64x32xf32, #tpu.memory_space<vmem>>, %arg2: memref<32x16xf32, #tpu.memory_space<vmem>>, %arg3: memref<1x16xf32, #tpu.memory_space<vmem>>, %arg4: memref<1x16xf32, #tpu.memory_space<vmem>>, %arg5: memref<64x16xf32, #tpu.memory_space<vmem>>, %arg6: memref<1x16xf32, #tpu.memory_space<vmem>>, %arg7: memref<1x16xf32, #tpu.memory_space<vmem>>, %arg8: memref<1x16xf32, #tpu.memory_space<vmem>>, %arg9: memref<1x16xf32, #tpu.memory_space<vmem>>) attributes {dimension_semantics = [#tpu.dimension_semantics<arbitrary>], iteration_bounds = array<i64: 4>, scalar_prefetch = 0 : i64, scratch_operands = 2 : i64, tpu.core_type = #tpu.core_type<tc>, window_params = [{transform_indices = @transform_0, window_bounds = array<i64: 64, 32>}, {pipeline_mode = #tpu.pipeline_mode<synchronous>, transform_indices = @transform_1, window_bounds = array<i64: 32, 16>}, {pipeline_mode = #tpu.pipeline_mode<synchronous>, transform_indices = @transform_2, window_bounds = array<i64: 1, 16>}, {pipeline_mode = #tpu.pipeline_mode<synchronous>, transform_indices = @transform_3, window_bounds = array<i64: 1, 16>}, {transform_indices = @transform_4, window_bounds = array<i64: 64, 16>}, {pipeline_mode = #tpu.pipeline_mode<synchronous>, transform_indices = @transform_5, window_bounds = array<i64: 1, 16>}, {pipeline_mode = #tpu.pipeline_mode<synchronous>, transform_indices = @transform_6, window_bounds = array<i64: 1, 16>}]} {
    %c0 = arith.constant 0 : index
    %c0_0 = arith.constant 0 : index
    %0 = vector.load %arg1[%c0, %c0_0] : memref<64x32xf32, #tpu.memory_space<vmem>>, vector<64x32xf32>
    %c0_1 = arith.constant 0 : index
    %c0_2 = arith.constant 0 : index
    %1 = vector.load %arg2[%c0_1, %c0_2] : memref<32x16xf32, #tpu.memory_space<vmem>>, vector<32x16xf32>
    %cst = arith.constant dense<0.000000e+00> : vector<64x16xf32>
    %2 = tpu.matmul %0, %1, %cst {dimension_numbers = #tpu.dot_dimension_numbers<[1], [0], [0], [1], [0, 0, 1, 1], [], []>} : vector<64x32xf32>, vector<32x16xf32>, vector<64x16xf32> -> vector<64x16xf32>
    %c0_3 = arith.constant 0 : index
    %c0_4 = arith.constant 0 : index
    %3 = vector.load %arg5[%c0_3, %c0_4] : memref<64x16xf32, #tpu.memory_space<vmem>>, vector<64x16xf32>
    tpu.vector_store %arg5[%c0_3, %c0_4], %2 {strides = array<i32>} : memref<64x16xf32, #tpu.memory_space<vmem>>, vector<64x16xf32>,
    %cst_5 = arith.constant dense<0.000000e+00> : vector<16xf32>
    %4 = vector.multi_reduction <add>, %2, %cst_5 [0] : vector<64x16xf32> to vector<16xf32>
    %5 = vector.shape_cast %4 : vector<16xf32> to vector<1x16xf32>
    %cst_6 = arith.constant 6.400000e+01 : f32
    %6 = vector.broadcast %cst_6 : f32 to vector<1x16xf32>
    %7 = arith.divf %5, %6 : vector<1x16xf32>
    %8 = vector.broadcast %7 : vector<1x16xf32> to vector<64x16xf32>
    %9 = arith.subf %2, %8 : vector<64x16xf32>
    %10 = arith.mulf %9, %9 : vector<64x16xf32>
    %cst_7 = arith.constant dense<0.000000e+00> : vector<16xf32>
    %11 = vector.multi_reduction <add>, %10, %cst_7 [0] : vector<64x16xf32> to vector<16xf32>
    %12 = vector.shape_cast %11 : vector<16xf32> to vector<1x16xf32>
    %c0_i32 = arith.constant 0 : i32
    %13 = arith.cmpi eq, %arg0, %c0_i32 : i32
    %14 = arith.extui %13 : i1 to i32
    %c0_i32_8 = arith.constant 0 : i32
    %15 = arith.cmpi ne, %14, %c0_i32_8 : i32
    scf.if %15 {
      %c0_12 = arith.constant 0 : index
      %c0_13 = arith.constant 0 : index
      %22 = vector.load %arg8[%c0_12, %c0_13] : memref<1x16xf32, #tpu.memory_space<vmem>>, vector<1x16xf32>
      tpu.vector_store %arg8[%c0_12, %c0_13], %7 {strides = array<i32>} : memref<1x16xf32, #tpu.memory_space<vmem>>, vector<1x16xf32>,
      %c0_14 = arith.constant 0 : index
      %c0_15 = arith.constant 0 : index
      %23 = vector.load %arg9[%c0_14, %c0_15] : memref<1x16xf32, #tpu.memory_space<vmem>>, vector<1x16xf32>
      tpu.vector_store %arg9[%c0_14, %c0_15], %12 {strides = array<i32>} : memref<1x16xf32, #tpu.memory_space<vmem>>, vector<1x16xf32>,
    } else {
    }
    %c0_i32_9 = arith.constant 0 : i32
    %16 = arith.cmpi sgt, %arg0, %c0_i32_9 : i32
    %17 = arith.extui %16 : i1 to i32
    %c0_i32_10 = arith.constant 0 : i32
    %18 = arith.cmpi ne, %17, %c0_i32_10 : i32
    scf.if %18 {
      %c64_i32 = arith.constant 64 : i32
      %22 = arith.muli %arg0, %c64_i32 : i32
      %23 = arith.sitofp %22 : i32 to f32
      %cst_12 = arith.constant 6.400000e+01 : f32
      %24 = arith.addf %23, %cst_12 : f32
      %c0_13 = arith.constant 0 : index
      %c0_14 = arith.constant 0 : index
      %25 = vector.load %arg8[%c0_13, %c0_14] : memref<1x16xf32, #tpu.memory_space<vmem>>, vector<1x16xf32>
      %26 = arith.subf %7, %25 : vector<1x16xf32>
      %c0_15 = arith.constant 0 : index
      %c0_16 = arith.constant 0 : index
      %27 = vector.load %arg8[%c0_15, %c0_16] : memref<1x16xf32, #tpu.memory_space<vmem>>, vector<1x16xf32>
      %cst_17 = arith.constant 6.400000e+01 : f32
      %28 = arith.divf %cst_17, %24 : f32
      %29 = vector.broadcast %28 : f32 to vector<1x16xf32>
      %30 = arith.mulf %26, %29 : vector<1x16xf32>
      %31 = arith.addf %27, %30 : vector<1x16xf32>
      %c0_18 = arith.constant 0 : index
      %c0_19 = arith.constant 0 : index
      %32 = vector.load %arg8[%c0_18, %c0_19] : memref<1x16xf32, #tpu.memory_space<vmem>>, vector<1x16xf32>
      tpu.vector_store %arg8[%c0_18, %c0_19], %31 {strides = array<i32>} : memref<1x16xf32, #tpu.memory_space<vmem>>, vector<1x16xf32>,
      %c0_20 = arith.constant 0 : index
      %c0_21 = arith.constant 0 : index
      %33 = vector.load %arg9[%c0_20, %c0_21] : memref<1x16xf32, #tpu.memory_space<vmem>>, vector<1x16xf32>
      %34 = arith.addf %33, %12 : vector<1x16xf32>
      %35 = arith.mulf %26, %26 : vector<1x16xf32>
      %cst_22 = arith.constant 6.400000e+01 : f32
      %36 = arith.divf %cst_22, %24 : f32
      %37 = arith.mulf %23, %36 : f32
      %38 = vector.broadcast %37 : f32 to vector<1x16xf32>
      %39 = arith.mulf %35, %38 : vector<1x16xf32>
      %40 = arith.addf %34, %39 : vector<1x16xf32>
      %c0_23 = arith.constant 0 : index
      %c0_24 = arith.constant 0 : index
      %41 = vector.load %arg9[%c0_23, %c0_24] : memref<1x16xf32, #tpu.memory_space<vmem>>, vector<1x16xf32>
      tpu.vector_store %arg9[%c0_23, %c0_24], %40 {strides = array<i32>} : memref<1x16xf32, #tpu.memory_space<vmem>>, vector<1x16xf32>,
    } else {
    }
    %c3_i32 = arith.constant 3 : i32
    %19 = arith.cmpi eq, %arg0, %c3_i32 : i32
    %20 = arith.extui %19 : i1 to i32
    %c0_i32_11 = arith.constant 0 : i32
    %21 = arith.cmpi ne, %20, %c0_i32_11 : i32
    scf.if %21 {
      %c0_12 = arith.constant 0 : index
      %c0_13 = arith.constant 0 : index
      %22 = vector.load %arg9[%c0_12, %c0_13] : memref<1x16xf32, #tpu.memory_space<vmem>>, vector<1x16xf32>
      %cst_14 = arith.constant 3.906250e-03 : f32
      %23 = vector.broadcast %cst_14 : f32 to vector<1x16xf32>
      %24 = arith.mulf %22, %23 : vector<1x16xf32>
      %cst_15 = arith.constant 9.99999974E-6 : f32
      %25 = vector.broadcast %cst_15 : f32 to vector<1x16xf32>
      %26 = arith.addf %24, %25 : vector<1x16xf32>
      %27 = math.rsqrt %26 : vector<1x16xf32>
      %c0_16 = arith.constant 0 : index
      %c0_17 = arith.constant 0 : index
      %28 = vector.load %arg3[%c0_16, %c0_17] : memref<1x16xf32, #tpu.memory_space<vmem>>, vector<1x16xf32>
      %29 = arith.mulf %28, %27 : vector<1x16xf32>
      %c0_18 = arith.constant 0 : index
      %c0_19 = arith.constant 0 : index
      %30 = vector.load %arg6[%c0_18, %c0_19] : memref<1x16xf32, #tpu.memory_space<vmem>>, vector<1x16xf32>
      tpu.vector_store %arg6[%c0_18, %c0_19], %29 {strides = array<i32>} : memref<1x16xf32, #tpu.memory_space<vmem>>, vector<1x16xf32>,
      %c0_20 = arith.constant 0 : index
      %c0_21 = arith.constant 0 : index
      %31 = vector.load %arg4[%c0_20, %c0_21] : memref<1x16xf32, #tpu.memory_space<vmem>>, vector<1x16xf32>
      %c0_22 = arith.constant 0 : index
      %c0_23 = arith.constant 0 : index
      %32 = vector.load %arg8[%c0_22, %c0_23] : memref<1x16xf32, #tpu.memory_space<vmem>>, vector<1x16xf32>
      %33 = arith.mulf %32, %29 : vector<1x16xf32>
      %34 = arith.subf %31, %33 : vector<1x16xf32>
      %c0_24 = arith.constant 0 : index
      %c0_25 = arith.constant 0 : index
      %35 = vector.load %arg7[%c0_24, %c0_25] : memref<1x16xf32, #tpu.memory_space<vmem>>, vector<1x16xf32>
      tpu.vector_store %arg7[%c0_24, %c0_25], %34 {strides = array<i32>} : memref<1x16xf32, #tpu.memory_space<vmem>>, vector<1x16xf32>,
    } else {
    }
    return
  }
  func.func @transform_0(%arg0: i32) -> (i32, i32) {
    %c0_i32 = arith.constant 0 : i32
    %c0_i32_0 = arith.constant 0 : i32
    return %arg0, %c0_i32 : i32, i32
  }
  func.func @transform_1(%arg0: i32) -> (i32, i32) {
    %c0_i32 = arith.constant 0 : i32
    %c0_i32_0 = arith.constant 0 : i32
    %c0_i32_1 = arith.constant 0 : i32
    return %c0_i32, %c0_i32_0 : i32, i32
  }
  func.func @transform_2(%arg0: i32) -> (i32, i32) {
    %c0_i32 = arith.constant 0 : i32
    %c0_i32_0 = arith.constant 0 : i32
    %c0_i32_1 = arith.constant 0 : i32
    return %c0_i32, %c0_i32_0 : i32, i32
  }
  func.func @transform_3(%arg0: i32) -> (i32, i32) {
    %c0_i32 = arith.constant 0 : i32
    %c0_i32_0 = arith.constant 0 : i32
    %c0_i32_1 = arith.constant 0 : i32
    return %c0_i32, %c0_i32_0 : i32, i32
  }
  func.func @transform_4(%arg0: i32) -> (i32, i32) {
    %c0_i32 = arith.constant 0 : i32
    %c0_i32_0 = arith.constant 0 : i32
    return %arg0, %c0_i32 : i32, i32
  }
  func.func @transform_5(%arg0: i32) -> (i32, i32) {
    %c0_i32 = arith.constant 0 : i32
    %c0_i32_0 = arith.constant 0 : i32
    %c0_i32_1 = arith.constant 0 : i32
    return %c0_i32, %c0_i32_0 : i32, i32
  }
  func.func @transform_6(%arg0: i32) -> (i32, i32) {
    %c0_i32 = arith.constant 0 : i32
    %c0_i32_0 = arith.constant 0 : i32
    %c0_i32_1 = arith.constant 0 : i32
    return %c0_i32, %c0_i32_0 : i32, i32
  }
}

</mosaic_0001>

<llo_original>
// kernel: tpu_custom_call.1
$region0: #{tpu_custom_call.1}
  #allocation0 [shape = 'u32[]', space=smem, size = 0x4, offset = 0x4, fixed_abs, tag = 'smem constant byte address 0x4 - core index']
  #allocation1 [shape = 'u32[72,128]{1,0:T(1,128)}', space=vmem, size = 0x9000, scoped, tag = 'internal scratch']
  #allocation2 [shape = 'f32[1,16]{1,0:T(1,128)}', space=vmem, size = 0x200, scoped, tag = 'scratch operand']
  #allocation3 [shape = 'f32[1,16]{1,0:T(1,128)}', space=vmem, size = 0x200, scoped, tag = 'scratch operand']
  %s0 = inlined_call_operand.vmem [shape: f32[256,32], index: 0, kind: input, shape index: {}]
  %s1 = inlined_call_operand.vmem [shape: f32[32,16], index: 1, kind: input, shape index: {}]
  %s2 = inlined_call_operand.vmem [shape: f32[1,16], index: 2, kind: input, shape index: {}]
  %s3 = inlined_call_operand.vmem [shape: f32[1,16], index: 3, kind: input, shape index: {}]
  %s4 = inlined_call_operand.vmem [shape: f32[256,16], index: 4, kind: output, shape index: {0}]
  %s5 = inlined_call_operand.hbm [shape: f32[1,16], index: 5, kind: output, shape index: {1}]
  %s6 = inlined_call_operand.hbm [shape: f32[1,16], index: 6, kind: output, shape index: {2}]
  %7 = xla_tuple %s4, %s5, %s6
  %s8 = sld [smem:[#allocation0]]
  $region77: #{tpu_custom_call.1} parent=0
    _
  %s10 = ssub.s32 1, %s8
  %s11 = scalar_select 0, %s10, %s8
  $region1: #{tpu_custom_call.1} parent=0
    #allocation4 [shape = 'u8[512]{0}', space=vmem, size = 0x400, scoped, tag = 'output window, operand 1, single buffered']
    #allocation5 [shape = 's32[2]{0}', space=sflag, size = 0x8, scoped, tag = 'scoped memory for tpu_custom_call.1']
    #allocation6 [shape = 'u8[512]{0}', space=vmem, size = 0x400, scoped, tag = 'output window, operand 2, single buffered']
    #allocation7 [shape = 's32[1]{0}', space=sflag, size = 0x4, scoped, tag = 'scoped memory for tpu_custom_call.1']
    %12 = vsyncpa [#allocation5], 0
    %13 = vsyncpa [#allocation7], 0
    loop: start=0, step=1, limit=6
    $region2: #{tpu_custom_call.1} parent=1 // loop_pre_header
      _
    $region3: #{tpu_custom_call.1} parent=1 // loop_header
      %s15 = sphi 0, %s19
      %p16 = scmp.ge.s32.totalorder %s15, 6
      %s25 = sphi 0, %s27
      %s28 = sphi 0, %s25
      %s29 = sphi 0, %s28
      %s45 = sphi 0, %s29
      %s49 = sphi 0, %s49
      %s51 = sphi 0, %s49
      %s52 = sphi 0, %s51
      %s66 = sphi 0, %s52
      %s70 = sphi 0, %s70
      %s72 = sphi 0, %s70
      %s73 = sphi 0, %s72
      %s87 = sphi 0, %s73
      %s91 = sphi 0, %s91
      %s93 = sphi 0, %s91
      %s94 = sphi 0, %s93
      %s108 = sphi 0, %s94
      %s114 = sphi 0, %s116
      %s117 = sphi 0, %s114
      %s118 = sphi 0, %s117
      %s134 = sphi 0, %s118
      %s138 = sphi 0, %s138
      %s140 = sphi 0, %s138
      %s141 = sphi 0, %s140
      %s155 = sphi 0, %s141
      %s159 = sphi 0, %s159
      %s161 = sphi 0, %s159
      %s162 = sphi 0, %s161
      %s176 = sphi 0, %s162
    $region4: #{tpu_custom_call.1} parent=1 // loop_header_branch
      %18 = sbr.rel (%p16) target = $region8
    $region5: #{tpu_custom_call.1} parent=1 // loop_body
      %s20 = ssub.s32 %s15, 1
      %s21 = ssub.s32 %s15, 2
      %s22 = sadd.s32 %s15, 1
      %s23 = ssub.s32 %s15, %s22
      %p24 = scmp.eq.s32.totalorder %s23, 0
      %s26 = sadd.s32 %s25, 1
      %s27 = scalar_select %p24, %s25, %s26
      %p30 = pneg %p24
      %p31 = scmp.eq.s32.totalorder %s15, 3
      %p32 = por %p30, %p31
      %p33 = scmp.ne.s32.totalorder %s25, %s28
      %p34 = scmp.eq.s32.totalorder %s15, 0
      %p35 = por %p33, %p34
      %p36 = scmp.ne.s32.totalorder %s25, %s28
      %p37 = scmp.eq.s32.totalorder %s20, 3
      %p38 = por %p36, %p37
      %p39 = scmp.ne.s32.totalorder %s28, %s29
      %p40 = scmp.eq.s32.totalorder %s20, 0
      %p41 = por %p39, %p40
      %p42 = scmp.ne.s32.totalorder %s28, %s29
      %p43 = scmp.eq.s32.totalorder %s21, 3
      %p44 = por %p42, %p43
      %p46 = scmp.ne.s32.totalorder %s29, %s45
      %p47 = scmp.eq.s32.totalorder %s21, 0
      %p48 = por %p46, %p47
      %s50 = sadd.s32 %s49, 1
      %p53 = scmp.eq.s32.totalorder %s15, 3
      %p54 = scmp.ne.s32.totalorder %s49, %s51
      %p55 = scmp.eq.s32.totalorder %s15, 0
      %p56 = por %p54, %p55
      %p57 = scmp.ne.s32.totalorder %s49, %s51
      %p58 = scmp.eq.s32.totalorder %s20, 3
      %p59 = por %p57, %p58
      %p60 = scmp.ne.s32.totalorder %s51, %s52
      %p61 = scmp.eq.s32.totalorder %s20, 0
      %p62 = por %p60, %p61
      %p63 = scmp.ne.s32.totalorder %s51, %s52
      %p64 = scmp.eq.s32.totalorder %s21, 3
      %p65 = por %p63, %p64
      %p67 = scmp.ne.s32.totalorder %s52, %s66
      %p68 = scmp.eq.s32.totalorder %s21, 0
      %p69 = por %p67, %p68
      %s71 = sadd.s32 %s70, 1
      %p74 = scmp.eq.s32.totalorder %s15, 3
      %p75 = scmp.ne.s32.totalorder %s70, %s72
      %p76 = scmp.eq.s32.totalorder %s15, 0
      %p77 = por %p75, %p76
      %p78 = scmp.ne.s32.totalorder %s70, %s72
      %p79 = scmp.eq.s32.totalorder %s20, 3
      %p80 = por %p78, %p79
      %p81 = scmp.ne.s32.totalorder %s72, %s73
      %p82 = scmp.eq.s32.totalorder %s20, 0
      %p83 = por %p81, %p82
      %p84 = scmp.ne.s32.totalorder %s72, %s73
      %p85 = scmp.eq.s32.totalorder %s21, 3
      %p86 = por %p84, %p85
      %p88 = scmp.ne.s32.totalorder %s73, %s87
      %p89 = scmp.eq.s32.totalorder %s21, 0
      %p90 = por %p88, %p89
      %s92 = sadd.s32 %s91, 1
      %p95 = scmp.eq.s32.totalorder %s15, 3
      %p96 = scmp.ne.s32.totalorder %s91, %s93
      %p97 = scmp.eq.s32.totalorder %s15, 0
      %p98 = por %p96, %p97
      %p99 = scmp.ne.s32.totalorder %s91, %s93
      %p100 = scmp.eq.s32.totalorder %s20, 3
      %p101 = por %p99, %p100
      %p102 = scmp.ne.s32.totalorder %s93, %s94
      %p103 = scmp.eq.s32.totalorder %s20, 0
      %p104 = por %p102, %p103
      %p105 = scmp.ne.s32.totalorder %s93, %s94
      %p106 = scmp.eq.s32.totalorder %s21, 3
      %p107 = por %p105, %p106
      %p109 = scmp.ne.s32.totalorder %s94, %s108
      %p110 = scmp.eq.s32.totalorder %s21, 0
      %p111 = por %p109, %p110
      %s112 = ssub.s32 %s15, %s22
      %p113 = scmp.eq.s32.totalorder %s112, 0
      %s115 = sadd.s32 %s114, 1
      %s116 = scalar_select %p113, %s114, %s115
      %p119 = pneg %p113
      %p120 = scmp.eq.s32.totalorder %s15, 3
      %p121 = por %p119, %p120
      %p122 = scmp.ne.s32.totalorder %s114, %s117
      %p123 = scmp.eq.s32.totalorder %s15, 0
      %p124 = por %p122, %p123
      %p125 = scmp.ne.s32.totalorder %s114, %s117
      %p126 = scmp.eq.s32.totalorder %s20, 3
      %p127 = por %p125, %p126
      %p128 = scmp.ne.s32.totalorder %s117, %s118
      %p129 = scmp.eq.s32.totalorder %s20, 0
      %p130 = por %p128, %p129
      %p131 = scmp.ne.s32.totalorder %s117, %s118
      %p132 = scmp.eq.s32.totalorder %s21, 3
      %p133 = por %p131, %p132
      %p135 = scmp.ne.s32.totalorder %s118, %s134
      %p136 = scmp.eq.s32.totalorder %s21, 0
      %p137 = por %p135, %p136
      %s139 = sadd.s32 %s138, 1
      %p142 = scmp.eq.s32.totalorder %s15, 3
      %p143 = scmp.ne.s32.totalorder %s138, %s140
      %p144 = scmp.eq.s32.totalorder %s15, 0
      %p145 = por %p143, %p144
      %p146 = scmp.ne.s32.totalorder %s138, %s140
      %p147 = scmp.eq.s32.totalorder %s20, 3
      %p148 = por %p146, %p147
      %p149 = scmp.ne.s32.totalorder %s140, %s141
      %p150 = scmp.eq.s32.totalorder %s20, 0
      %p151 = por %p149, %p150
      %p152 = scmp.ne.s32.totalorder %s140, %s141
      %p153 = scmp.eq.s32.totalorder %s21, 3
      %p154 = por %p152, %p153
      %p156 = scmp.ne.s32.totalorder %s141, %s155
      %p157 = scmp.eq.s32.totalorder %s21, 0
      %p158 = por %p156, %p157
      %s160 = sadd.s32 %s159, 1
      %p163 = scmp.eq.s32.totalorder %s15, 3
      %p164 = scmp.ne.s32.totalorder %s159, %s161
      %p165 = scmp.eq.s32.totalorder %s15, 0
      %p166 = por %p164, %p165
      %p167 = scmp.ne.s32.totalorder %s159, %s161
      %p168 = scmp.eq.s32.totalorder %s20, 3
      %p169 = por %p167, %p168
      %p170 = scmp.ne.s32.totalorder %s161, %s162
      %p171 = scmp.eq.s32.totalorder %s20, 0
      %p172 = por %p170, %p171
      %p173 = scmp.ne.s32.totalorder %s161, %s162
      %p174 = scmp.eq.s32.totalorder %s21, 3
      %p175 = por %p173, %p174
      %p177 = scmp.ne.s32.totalorder %s162, %s176
      %p178 = scmp.eq.s32.totalorder %s21, 0
      %p179 = por %p177, %p178
      %p180 = scmp.le.s32.totalorder 1, %s15
      %p181 = scmp.lt.s32.totalorder %s15, 5
      %p182 = pnand %p180, %p181
      %p183 = pneg %p182
      // Predicated region
      $region9: #{tpu_custom_call.1} parent=5 // pred_check
        _
      $region10: #{tpu_custom_call.1} parent=5 // pred_check_branch
        %185 = sbr.rel (%p182) target = $region12
      $region11: #{tpu_custom_call.1} parent=5 // pred_region
        %s186 = ssub.s32 %s15, 1
        // Predicated region
        $region13: #{tpu_custom_call.1} parent=11 // pred_check
          %p187 = pneg %p62
        $region14: #{tpu_custom_call.1} parent=11 // pred_check_branch
          %189 = sbr.rel (%p187) target = $region16
        $region15: #{tpu_custom_call.1} parent=11 // pred_region
          _
        $region16: #{tpu_custom_call.1} parent=11 // pred_fallthru
          _
        // Predicated region
        $region17: #{tpu_custom_call.1} parent=11 // pred_check
          %p190 = pneg %p83
        $region18: #{tpu_custom_call.1} parent=11 // pred_check_branch
          %192 = sbr.rel (%p190) target = $region20
        $region19: #{tpu_custom_call.1} parent=11 // pred_region
          _
        $region20: #{tpu_custom_call.1} parent=11 // pred_fallthru
          _
        // Predicated region
        $region21: #{tpu_custom_call.1} parent=11 // pred_check
          %p193 = pneg %p104
        $region22: #{tpu_custom_call.1} parent=11 // pred_check_branch
          %195 = sbr.rel (%p193) target = $region24
        $region23: #{tpu_custom_call.1} parent=11 // pred_region
          _
        $region24: #{tpu_custom_call.1} parent=11 // pred_fallthru
          _
      $region12: #{tpu_custom_call.1} parent=5 // pred_fallthru
        _
      %p196 = scmp.lt.s32.totalorder %s15, 4
      // Predicated region
      $region25: #{tpu_custom_call.1} parent=5 // pred_check
        %p197 = pneg %p196
      $region26: #{tpu_custom_call.1} parent=5 // pred_check_branch
        %199 = sbr.rel (%p197) target = $region28
      $region27: #{tpu_custom_call.1} parent=5 // pred_region
        // Predicated region
        $region29: #{tpu_custom_call.1} parent=27 // pred_check
          %p200 = pneg %p35
        $region30: #{tpu_custom_call.1} parent=27 // pred_check_branch
          %202 = sbr.rel (%p200) target = $region32
        $region31: #{tpu_custom_call.1} parent=27 // pred_region
          %s203 = smul.u32 8, %s15
          %p204 = scmp.lt.s32.totalorder %s203, 31
          %s205 = scalar_select %p204, %s203, 31
          %s206 = smul.addr %s205, 8
          %s207 = scalar_lea.vmem %s0, %s206
          %s208 = smul.u32 8, %s15
        $region32: #{tpu_custom_call.1} parent=27 // pred_fallthru
          _
      $region28: #{tpu_custom_call.1} parent=5 // pred_fallthru
        _
      %p209 = scmp.le.s32.totalorder 1, %s15
      %p210 = scmp.lt.s32.totalorder %s15, 5
      %p211 = pnand %p209, %p210
      %p212 = pneg %p211
      // Predicated region
      $region33: #{tpu_custom_call.1} parent=5 // pred_check
        _
      $region34: #{tpu_custom_call.1} parent=5 // pred_check_branch
        %214 = sbr.rel (%p211) target = $region36
      $region35: #{tpu_custom_call.1} parent=5 // pred_region
        %s215 = ssub.s32 %s15, 1
        %s216 = smul.u32 8, %s20
        %p217 = scmp.lt.s32.totalorder %s216, 31
        %s218 = scalar_select %p217, %s216, 31
        %s219 = smul.addr %s218, 8
        %s220 = scalar_lea.vmem %s0, %s219
        %p221 = pneg %p41
        %p222 = pneg %p38
        %p223 = pneg %p62
        %p224 = pneg %p59
        %p225 = pneg %p83
        %p226 = pneg %p80
        %p227 = pneg %p104
        %p228 = pneg %p101
        %p229 = pneg %p130
        %p230 = pneg %p127
        %s231 = smul.u32 8, %s20
        %p232 = scmp.lt.s32.totalorder %s231, 31
        %s233 = scalar_select %p232, %s231, 31
        %s234 = smul.addr %s233, 8
        %s235 = scalar_lea.vmem %s4, %s234
        %p236 = pneg %p151
        %p237 = pneg %p148
        %p238 = pneg %p172
        %p239 = pneg %p169
        %s240 = smul.u32 8, %s20
        %p241 = scmp.lt.s32.totalorder %s240, 31
        %s242 = scalar_select %p241, %s240, 31
        %s243 = smul.addr %s242, 8
        %s244 = scalar_lea.vmem %s0, %s243
        %s245 = smul.u32 8, %s20
        %s246 = smul.u32 8, %s20
        %p247 = scmp.lt.s32.totalorder %s246, 31
        %s248 = scalar_select %p247, %s246, 31
        %s249 = smul.addr %s248, 8
        %s250 = scalar_lea.vmem %s4, %s249
        %s251 = smul.u32 8, %s20
        %v252 = vld [vmem:[%s244] sm:$0xff]
        %v253 = vld [vmem:[%s244 + $0x8] sm:$0xff]
        %v254 = vld [vmem:[%s244 + $0x10] sm:$0xff]
        %v255 = vld [vmem:[%s244 + $0x18] sm:$0xff]
        %v256 = vld [vmem:[%s244 + $0x20] sm:$0xff]
        %v257 = vld [vmem:[%s244 + $0x28] sm:$0xff]
        %v258 = vld [vmem:[%s244 + $0x30] sm:$0xff]
        %v259 = vld [vmem:[%s244 + $0x38] sm:$0xff]
        %v260 = vld [vmem:[%s1] sm:$0xff]
        %v261 = vld [vmem:[%s1 + $0x8] sm:$0xff]
        %v262 = vld [vmem:[%s1 + $0x10] sm:$0xff]
        %v263 = vld [vmem:[%s1 + $0x18] sm:$0xff]
        %vm264 = vcmask 261120
        %v266 = vsel %vm264, %v252, 0
        %v269 = vsel %vm264, %v253, 0
        %v272 = vsel %vm264, %v254, 0
        %v275 = vsel %vm264, %v255, 0
        %v278 = vsel %vm264, %v256, 0
        %v281 = vsel %vm264, %v257, 0
        %v284 = vsel %vm264, %v258, 0
        %v287 = vsel %vm264, %v259, 0
        %289 = vmatpush.msra.mxu0 0.0
        %290 = vmatpush.msra.mxu0 0.0
        %291 = vmatpush.msra.mxu0 0.0
        %292 = vmatpush.msra.mxu0 0.0
        %293 = vmatpush.msra.mxu0 0.0
        %294 = vmatpush.msra.mxu0 0.0
        %295 = vmatpush.msra.mxu0 0.0
        %296 = vmatpush.msra.mxu0 0.0
        %297 = vmatpush.msra.mxu0 0.0
        %298 = vmatpush.msra.mxu0 0.0
        %299 = vmatpush.msra.mxu0 0.0
        %300 = vmatpush.msra.mxu0 0.0
        %301 = vmatpush.msra.mxu0 %v263
        %302 = vmatpush.msra.mxu0 %v262
        %303 = vmatpush.msra.mxu0 %v261
        %304 = vmatpush.msra.mxu0 %v260
        %305 = vmatmul.f32.gmra.mxu0 %v266
        %v306 = vpop.f32.mrf.mxu0
        %v307 = vadd.f32 0.0, %v306
        %308 = vmatmul.f32.gmra.mxu0 %v269
        %v309 = vpop.f32.mrf.mxu0
        %v310 = vadd.f32 0.0, %v309
        %311 = vmatmul.f32.gmra.mxu0 %v272
        %v312 = vpop.f32.mrf.mxu0
        %v313 = vadd.f32 0.0, %v312
        %314 = vmatmul.f32.gmra.mxu0 %v275
        %v315 = vpop.f32.mrf.mxu0
        %v316 = vadd.f32 0.0, %v315
        %317 = vmatmul.f32.gmra.mxu0 %v278
        %v318 = vpop.f32.mrf.mxu0
        %v319 = vadd.f32 0.0, %v318
        %320 = vmatmul.f32.gmra.mxu0 %v281
        %v321 = vpop.f32.mrf.mxu0
        %v322 = vadd.f32 0.0, %v321
        %323 = vmatmul.f32.gmra.mxu0 %v284
        %v324 = vpop.f32.mrf.mxu0
        %v325 = vadd.f32 0.0, %v324
        %326 = vmatmul.f32.gmra.mxu0 %v287
        %v327 = vpop.f32.mrf.mxu0
        %v328 = vadd.f32 0.0, %v327
        %329 = vdwg.mxu0
        %vm330 = vcmask 130048
        %331 = vst.msk [vmem:[%s250] sm:$0xff] %vm330, %v307
        %332 = vst.msk [vmem:[%s250 + $0x8] sm:$0xff] %vm330, %v310
        %333 = vst.msk [vmem:[%s250 + $0x10] sm:$0xff] %vm330, %v313
        %334 = vst.msk [vmem:[%s250 + $0x18] sm:$0xff] %vm330, %v316
        %335 = vst.msk [vmem:[%s250 + $0x20] sm:$0xff] %vm330, %v319
        %336 = vst.msk [vmem:[%s250 + $0x28] sm:$0xff] %vm330, %v322
        %337 = vst.msk [vmem:[%s250 + $0x30] sm:$0xff] %vm330, %v325
        %338 = vst.msk [vmem:[%s250 + $0x38] sm:$0xff] %vm330, %v328
        %v339 = vsel %vm330, %v307, 0.0
        %v340 = vsel %vm330, %v310, 0.0
        %v341 = vadd.f32 %v339, %v340
        %v342 = vsel %vm330, %v313, 0.0
        %v343 = vadd.f32 %v341, %v342
        %v344 = vsel %vm330, %v316, 0.0
        %v345 = vadd.f32 %v343, %v344
        %v346 = vsel %vm330, %v319, 0.0
        %v347 = vadd.f32 %v345, %v346
        %v348 = vsel %vm330, %v322, 0.0
        %v349 = vadd.f32 %v347, %v348
        %v350 = vsel %vm330, %v325, 0.0
        %v351 = vadd.f32 %v349, %v350
        %v352 = vsel %vm330, %v328, 0.0
        %v353 = vadd.f32 %v351, %v352
        %v354 = vrot.slane %v353, 4
        %v355 = vadd.f32 %v353, %v354
        %v356 = vrot.slane %v355, 2
        %v357 = vadd.f32 %v355, %v356
        %v358 = vrot.slane %v357, 1
        %v359 = vadd.f32 %v357, %v358
        %v360 = vrcp.pop 64.0
        %v361 = vmul.f32 64.0, %v360
        %v362 = vsub.f32 1.0, %v361
        %v363 = vmul.f32 %v360, %v362
        %v364 = vadd.f32 %v360, %v363
        %vm365 = vweird.f32 %v360
        %v366 = vsel %vm365, %v360, %v364
        %v367 = vmul.f32 %v359, %v366
        %v368 = vsub.f32 %v307, %v367
        %v369 = vsub.f32 %v310, %v367
        %v370 = vsub.f32 %v313, %v367
        %v371 = vsub.f32 %v316, %v367
        %v372 = vsub.f32 %v319, %v367
        %v373 = vsub.f32 %v322, %v367
        %v374 = vsub.f32 %v325, %v367
        %v375 = vsub.f32 %v328, %v367
        %v376 = vmul.f32 %v368, %v368
        %v377 = vmul.f32 %v369, %v369
        %v378 = vmul.f32 %v370, %v370
        %v379 = vmul.f32 %v371, %v371
        %v380 = vmul.f32 %v372, %v372
        %v381 = vmul.f32 %v373, %v373
        %v382 = vmul.f32 %v374, %v374
        %v383 = vmul.f32 %v375, %v375
        %v384 = vsel %vm330, %v376, 0.0
        %v385 = vsel %vm330, %v377, 0.0
        %v386 = vadd.f32 %v384, %v385
        %v387 = vsel %vm330, %v378, 0.0
        %v388 = vadd.f32 %v386, %v387
        %v389 = vsel %vm330, %v379, 0.0
        %v390 = vadd.f32 %v388, %v389
        %v391 = vsel %vm330, %v380, 0.0
        %v392 = vadd.f32 %v390, %v391
        %v393 = vsel %vm330, %v381, 0.0
        %v394 = vadd.f32 %v392, %v393
        %v395 = vsel %vm330, %v382, 0.0
        %v396 = vadd.f32 %v394, %v395
        %v397 = vsel %vm330, %v383, 0.0
        %v398 = vadd.f32 %v396, %v397
        %v399 = vrot.slane %v398, 4
        %v400 = vadd.f32 %v398, %v399
        %v401 = vrot.slane %v400, 2
        %v402 = vadd.f32 %v400, %v401
        %v403 = vrot.slane %v402, 1
        %v404 = vadd.f32 %v402, %v403
        %p405 = scmp.eq.s32.totalorder %s20, 0
        // Predicated region
        $region37: #{tpu_custom_call.1} parent=35 // pred_check
          %p406 = pneg %p405
        $region38: #{tpu_custom_call.1} parent=35 // pred_check_branch
          %408 = sbr.rel (%p406) target = $region40
        $region39: #{tpu_custom_call.1} parent=35 // pred_region
          %vm409 = vcmask 122880
          %410 = vst.msk [vmem:[#allocation2] sm:$0x1] %vm409, %v367
          %411 = vst.msk [vmem:[#allocation3] sm:$0x1] %vm409, %v404
        $region40: #{tpu_custom_call.1} parent=35 // pred_fallthru
          _
        %p412 = scmp.gt.s32.totalorder %s20, 0
        // Predicated region
        $region41: #{tpu_custom_call.1} parent=35 // pred_check
          %p413 = pneg %p412
        $region42: #{tpu_custom_call.1} parent=35 // pred_check_branch
          %415 = sbr.rel (%p413) target = $region44
        $region43: #{tpu_custom_call.1} parent=35 // pred_region
          %s416 = smul.u32 %s20, 64
          %s417 = scvt.s32.f32 %s416
          %s418 = sadd.f32 %s417, 64.0
          %v419 = vld [vmem:[#allocation2] sm:$0x1]
          %v420 = vsub.f32 %v367, %v419
          %v421 = vstv %s418
          %v422 = vrcp.pop %v421
          %v423 = vmul.f32 %v421, %v422
          %v424 = vsub.f32 1.0, %v423
          %v425 = vmul.f32 %v422, %v424
          %v426 = vadd.f32 %v422, %v425
          %vm427 = vweird.f32 %v421
          %vm428 = vweird.f32 %v422
          %vm429 = vmor %vm427, %vm428
          %v430 = vsel %vm429, %v422, %v426
          %v431 = vand.u32 2147483647, %v421
          %vm432 = vcmp.eq.f32.partialorder %v431, 8.507059e+37
          %v433 = vand.u32 %v421, 2147483648
          %v434 = vor.u32 1.1754944e-38, %v433
          %v435 = vsel %vm432, %v434, %v430
          %s436 = vtos %v435
          %s437 = smul.f32 64.0, %s436
          %v438 = vstv %s437
          %v439 = vmul.f32 %v420, %v438
          %v440 = vadd.f32 %v419, %v439
          %vm441 = vcmask 122880
          %442 = vst.msk [vmem:[#allocation2] sm:$0x1] %vm441, %v440
          %v443 = vld [vmem:[#allocation3] sm:$0x1]
          %v444 = vadd.f32 %v443, %v404
          %v445 = vmul.f32 %v420, %v420
          %s446 = smul.f32 %s417, %s437
          %v447 = vstv %s446
          %v448 = vmul.f32 %v445, %v447
          %v449 = vadd.f32 %v444, %v448
          %450 = vst.msk [vmem:[#allocation3] sm:$0x1] %vm441, %v449
        $region44: #{tpu_custom_call.1} parent=35 // pred_fallthru
          _
        %p451 = scmp.eq.s32.totalorder %s20, 3
        // Predicated region
        $region45: #{tpu_custom_call.1} parent=35 // pred_check
          %p452 = pneg %p451
        $region46: #{tpu_custom_call.1} parent=35 // pred_check_branch
          %454 = sbr.rel (%p452) target = $region48
        $region47: #{tpu_custom_call.1} parent=35 // pred_region
          %v455 = vld [vmem:[#allocation3] sm:$0x1]
          %v456 = vmul.f32 %v455, 0.00390625
          %v457 = vadd.f32 %v456, 1e-05
          %v458 = vrsqrt.pop %v457
          %v459 = vmul.f32 %v458, %v457
          %v460 = vmul.f32 %v459, %v458
          %v461 = vmul.f32 0.5, %v460
          %v462 = vsub.f32 1.5, %v461
          %v463 = vmul.f32 %v458, %v462
          %vm464 = vweird.f32 %v457
          %vm465 = vweird.f32 %v458
          %vm466 = vmor %vm464, %vm465
          %v467 = vsel %vm466, %v458, %v463
          %v468 = vld [vmem:[%s2] sm:$0x1]
          %v469 = vmul.f32 %v468, %v467
          %vm470 = vcmask 122880
          %471 = vst.msk [vmem:[#allocation4] sm:$0x1] %vm470, %v469
          %v472 = vld [vmem:[%s3] sm:$0x1]
          %v473 = vld [vmem:[#allocation2] sm:$0x1]
          %v474 = vmul.f32 %v473, %v469
          %v475 = vsub.f32 %v472, %v474
          %476 = vst.msk [vmem:[#allocation6] sm:$0x1] %vm470, %v475
        $region48: #{tpu_custom_call.1} parent=35 // pred_fallthru
          _
        %s477 = smul.u32 8, %s20
        %p478 = scmp.lt.s32.totalorder %s477, 31
        %s479 = scalar_select %p478, %s477, 31
        %s480 = smul.addr %s479, 8
        %s481 = scalar_lea.vmem %s4, %s480
        // Predicated region
        $region49: #{tpu_custom_call.1} parent=35 // pred_check
          %p482 = pneg %p127
        $region50: #{tpu_custom_call.1} parent=35 // pred_check_branch
          %484 = sbr.rel (%p482) target = $region52
        $region51: #{tpu_custom_call.1} parent=35 // pred_region
          %s485 = smul.u32 8, %s20
        $region52: #{tpu_custom_call.1} parent=35 // pred_fallthru
          _
        // Predicated region
        $region53: #{tpu_custom_call.1} parent=35 // pred_check
          %p486 = pneg %p148
        $region54: #{tpu_custom_call.1} parent=35 // pred_check_branch
          %488 = sbr.rel (%p486) target = $region56
        $region55: #{tpu_custom_call.1} parent=35 // pred_region
          %490 = vsyncadd [#allocation5], 0
          %s492 = sshll.u32 [#allocation4], 4
          %s493 = int_to_ptr.vmem [resolvable:$true] %s492
          %s494 = sshll.u32 %s5, 4
          %s495 = int_to_ptr.hbm [resolvable:$true] %s494
          %497 = dma.vmem_to_hbm [thread:$0]  %s493, 16, %s495, [#allocation5]
        $region56: #{tpu_custom_call.1} parent=35 // pred_fallthru
          _
        // Predicated region
        $region57: #{tpu_custom_call.1} parent=35 // pred_check
          %p498 = pneg %p169
        $region58: #{tpu_custom_call.1} parent=35 // pred_check_branch
          %500 = sbr.rel (%p498) target = $region60
        $region59: #{tpu_custom_call.1} parent=35 // pred_region
          %502 = vsyncadd [#allocation7], 0
          %s504 = sshll.u32 [#allocation6], 4
          %s505 = int_to_ptr.vmem [resolvable:$true] %s504
          %s506 = sshll.u32 %s6, 4
          %s507 = int_to_ptr.hbm [resolvable:$true] %s506
          %509 = dma.vmem_to_hbm [thread:$0]  %s505, 16, %s507, [#allocation7]
        $region60: #{tpu_custom_call.1} parent=35 // pred_fallthru
          _
        // Predicated region
        $region61: #{tpu_custom_call.1} parent=35 // pred_check
          %p510 = pneg %p148
        $region62: #{tpu_custom_call.1} parent=35 // pred_check_branch
          %512 = sbr.rel (%p510) target = $region64
        $region63: #{tpu_custom_call.1} parent=35 // pred_region
          %514 = dma.done [#allocation5], 16
        $region64: #{tpu_custom_call.1} parent=35 // pred_fallthru
          _
        // Predicated region
        $region65: #{tpu_custom_call.1} parent=35 // pred_check
          %p515 = pneg %p169
        $region66: #{tpu_custom_call.1} parent=35 // pred_check_branch
          %517 = sbr.rel (%p515) target = $region68
        $region67: #{tpu_custom_call.1} parent=35 // pred_region
          %519 = dma.done [#allocation7], 16
        $region68: #{tpu_custom_call.1} parent=35 // pred_fallthru
          _
      $region36: #{tpu_custom_call.1} parent=5 // pred_fallthru
        _
      %p520 = scmp.le.s32.totalorder 2, %s15
      // Predicated region
      $region69: #{tpu_custom_call.1} parent=5 // pred_check
        %p521 = pneg %p520
      $region70: #{tpu_custom_call.1} parent=5 // pred_check_branch
        %523 = sbr.rel (%p521) target = $region72
      $region71: #{tpu_custom_call.1} parent=5 // pred_region
        %s524 = ssub.s32 %s15, 2
        // Predicated region
        $region73: #{tpu_custom_call.1} parent=71 // pred_check
          %p525 = pneg %p133
        $region74: #{tpu_custom_call.1} parent=71 // pred_check_branch
          %527 = sbr.rel (%p525) target = $region76
        $region75: #{tpu_custom_call.1} parent=71 // pred_region
          %s528 = smul.u32 8, %s21
          %p529 = scmp.lt.s32.totalorder %s528, 31
          %s530 = scalar_select %p529, %s528, 31
          %s531 = smul.addr %s530, 8
          %s532 = scalar_lea.vmem %s4, %s531
        $region76: #{tpu_custom_call.1} parent=71 // pred_fallthru
          _
      $region72: #{tpu_custom_call.1} parent=5 // pred_fallthru
        _
    $region6: #{tpu_custom_call.1} parent=1 // loop_footer
      %s19 = sadd.s32 1, %s15
    $region7: #{tpu_custom_call.1} parent=1 // loop_footer_branch
      %14 = sbr.rel target = $region3
    $region8: #{tpu_custom_call.1} parent=1 // loop_exit
      _
    %533 = vsyncpa [#allocation5], 1
    %s534 = scalar_lea.sflag [#allocation5], 1
    %535 = vsyncpa %s534, 1
    %536 = vsyncpa [#allocation7], 1

</llo_original>
